<compile_context>
chip_gen: v7x
topology: tpu7x:2x2x1
jax: 0.10.0
libtpu: 0.0.40
codegen_flags: <defaults>
</compile_context>

<pallas_src>
import math
from math import gcd

import jax
import jax.numpy as jnp
from jax.experimental import pallas as pl
from jax.experimental.pallas import tpu as pltpu


def make_positional_encoding(d_model: int, max_len: int = 64, dtype=jnp.float32):
    """Deterministically build the `pe` buffer exactly as the PyTorch __init__."""
    position = jnp.arange(max_len, dtype=jnp.float32)[:, None]            # (max_len, 1)
    div_term = jnp.exp(
        jnp.arange(0, d_model, 2, dtype=jnp.float32)
        * (-math.log(10000.0) / d_model)
    )                                                                     # (d_model/2,)
    pe = jnp.zeros((max_len, 1, d_model), dtype=jnp.float32)
    pe = pe.at[:, 0, 0::2].set(jnp.sin(position * div_term))
    pe = pe.at[:, 0, 1::2].set(jnp.cos(position * div_term))
    return pe.astype(dtype)


def _make_pe_add_kernel(ts: int, D: int, BD: int, lane_chunk: int, sub: int):
    """Kernel factory; all tiling constants are baked in as Python statics."""
    reps = lane_chunk // D          # pe lane-replication factor inside one chunk
    n_chunks = BD // lane_chunk     # lane-aligned chunks per block (static unroll)

    def kernel(x_ref, pe_ref, o_ref):
        # x_ref / o_ref: (ts, B*D)  lane-dense, streamed block.
        # pe_ref:        (S_pad, D) fully VMEM-resident (constant index map).
        start = pl.program_id(0) * ts
        if ts % sub == 0:
            start = pl.multiple_of(start, sub)
        pe = pe_ref[pl.ds(start, ts), :]                      # (ts, D)
        # At most a (ts, lane_chunk) replica is materialized (never (ts, B*D)).
        pe_c = pe if reps == 1 else jnp.tile(pe, (1, reps))   # (ts, lane_chunk)
        for c in range(n_chunks):                             # static, lane-group aligned
            lo = c * lane_chunk
            o_ref[:, lo:lo + lane_chunk] = x_ref[:, lo:lo + lane_chunk] + pe_c

    return kernel


def positional_encoding_forward(
    x,
    pe,
    *,
    dropout_p: float = 0.1,
    training: bool = False,
    seq_tile: int | None = None,
    block_bytes: int = 4 << 20,
    pallas_min_elems: int = 1 << 14,
):
    """x: (S, B, D); pe: (max_len, 1, D). Returns (S, B, D) = dropout(x + pe[:S])."""
    if training and dropout_p > 0.0:
        # TODO(synk): training-mode dropout needs pltpu.prng_seed/prng_random_bits
        # and cannot bit-match torch's RNG stream; only inference is implemented.
        raise NotImplementedError("training-mode dropout is not implemented")

    S, B, D = x.shape
    if S > pe.shape[0]:
        raise ValueError(f"seq_len {S} exceeds positional-encoding max_len {pe.shape[0]}")
    pe_rows = pe[:S, 0, :].astype(x.dtype)                    # (S, D)

    # Tiny inputs: fixed pallas_call launch / pipeline-prologue cost dominates.
    if S * B * D < pallas_min_elems:
        return x + pe_rows[:, None, :]

    BD = B * D
    itemsize = jnp.dtype(x.dtype).itemsize
    sub = max(8, 32 // itemsize)      # dtype-aware sublane multiple: 8 f32 / 16 bf16 / 32 int8

    # --- sequence tile: ~block_bytes per x block, multiple of `sub`, and >= 2
    # grid steps when S allows (megacore sharding on v7x + active pipelining).
    bytes_per_row = BD * itemsize
    if seq_tile is None:
        ts = max(sub, (block_bytes // max(bytes_per_row, 1)) // sub * sub)
    else:
        ts = S if seq_tile >= S else max(sub, (seq_tile // sub) * sub)
    if S < 2 * sub:
        ts = S                                        # single full-extent block
    else:
        half = max(sub, (pl.cdiv(S, 2) // sub) * sub)
        ts = min(ts, half)                            # guarantees >= 2 grid steps

    num_blocks = pl.cdiv(S, ts)
    S_pad = num_blocks * ts

    # pe stays resident in VMEM; pad rows so the in-kernel slice of the last
    # (possibly partial) block never reads out of bounds.
    if S_pad > S:
        pe_rows = jnp.pad(pe_rows, ((0, S_pad - S), (0, 0)))

    # --- lane chunking (avoid a (ts, B*D) tiled-pe temporary) ---
    if D % 128 == 0:
        lane_chunk = D                                # no pe replication at all
    elif BD % 128 == 0:
        lcm = D * 128 // gcd(D, 128)
        lane_chunk = lcm if (lcm <= BD and BD % lcm == 0) else BD
    else:
        lane_chunk = BD                               # odd shapes: masked edge stores

    kernel = _make_pe_add_kernel(ts, D, BD, lane_chunk, sub)

    x2 = x.reshape(S, BD)                             # lane-dense 2-D view (contiguous)

    out2 = pl.pallas_call(
        kernel,
        out_shape=jax.ShapeDtypeStruct((S, BD), x.dtype),
        grid_spec=pltpu.PrefetchScalarGridSpec(
            num_scalar_prefetch=0,
            grid=(num_blocks,),
            in_specs=[
                pl.BlockSpec((ts, BD), lambda i: (i, 0)),     # x, streamed
                pl.BlockSpec((S_pad, D), lambda i: (0, 0)),   # pe, VMEM-resident
            ],
            out_specs=pl.BlockSpec((ts, BD), lambda i: (i, 0)),
        ),
        compiler_params=pltpu.CompilerParams(
            dimension_semantics=("parallel",),        # megacore split on v7x
            vmem_limit_bytes=48 * 1024 * 1024,        # > v5e's 16 MiB default, < v7x 64 MiB
        ),
    )(x2, pe_rows)

    return out2.reshape(S, B, D)


if __name__ == "__main__":
    key = jax.random.PRNGKey(0)

    # Case 1: D < 128, B*D = 128 (lane-dense flat view, pe replicated to one
    # 128-lane chunk), auto tiling -> 2 grid steps.
    S, B, D = 16, 4, 32
    x = jax.random.normal(key, (S, B, D), dtype=jnp.float32)
    pe = make_positional_encoding(d_model=D, max_len=64)
    ref = x + pe[:S]
    out = positional_encoding_forward(x, pe, pallas_min_elems=0)
    out = jax.block_until_ready(out)
    assert out.shape == (S, B, D)
    assert jnp.allclose(out, ref, atol=1e-6, rtol=1e-6)

    # Case 2: D % 128 == 0 (no pe replication, per-batch lane chunks),
    # S not a multiple of 8 -> single full-extent block.
    S2, B2, D2 = 12, 2, 128
    k2 = jax.random.PRNGKey(0)
    x2 = jax.random.normal(k2, (S2, B2, D2), dtype=jnp.float32)
    pe2 = make_positional_encoding(d_model=D2, max_len=64)
    ref2 = x2 + pe2[:S2]
    out2 = positional_encoding_forward(x2, pe2, pallas_min_elems=0)
    out2 = jax.block_until_ready(out2)
    assert jnp.allclose(out2, ref2, atol=1e-6, rtol=1e-6)

    # Case 3: bfloat16 (dtype-aware sublane rounding of the sequence tile) with
    # an explicit seq_tile exercising the multi-block pipeline + resident-pe slicing.
    S3, B3, D3 = 32, 4, 32
    k3 = jax.random.PRNGKey(0)
    x3 = jax.random.normal(k3, (S3, B3, D3), dtype=jnp.bfloat16)
    pe3 = make_positional_encoding(d_model=D3, max_len=64)
    ref3 = x3 + pe3[:S3].astype(jnp.bfloat16)
    out3 = positional_encoding_forward(x3, pe3, pallas_min_elems=0, seq_tile=16)
    out3 = jax.block_until_ready(out3)
    assert jnp.allclose(out3.astype(jnp.float32), ref3.astype(jnp.float32),
                        atol=1e-2, rtol=1e-2)

    print("KERNEL_OK")
</pallas_src>

<mosaic_0001>
module attributes {stable_mosaic.version = 11 : i64} {
  func.func @kernel(%arg0: i32, %arg1: memref<8x128xf32, #tpu.memory_space<vmem>>, %arg2: memref<16x32xf32, #tpu.memory_space<vmem>>, %arg3: memref<8x128xf32, #tpu.memory_space<vmem>>) attributes {dimension_semantics = [#tpu.dimension_semantics<parallel>], iteration_bounds = array<i64: 2>, scalar_prefetch = 0 : i64, scratch_operands = 0 : i64, tpu.core_type = #tpu.core_type<tc>, window_params = [{transform_indices = @transform_0, window_bounds = array<i64: 8, 128>}, {pipeline_mode = #tpu.pipeline_mode<synchronous>, transform_indices = @transform_1, window_bounds = array<i64: 16, 32>}, {transform_indices = @transform_2, window_bounds = array<i64: 8, 128>}]} {
    %c8_i32 = arith.constant 8 : i32
    %0 = arith.muli %arg0, %c8_i32 : i32
    %1 = tpu.assume_multiple %0, 8 : i32
    %2 = arith.index_cast %1 : i32 to index
    %c0 = arith.constant 0 : index
    %3 = vector.load %arg2[%2, %c0] : memref<16x32xf32, #tpu.memory_space<vmem>>, vector<8x32xf32>
    %4 = tpu.concatenate %3, %3, %3, %3 in 1 : vector<8x32xf32>, vector<8x32xf32>, vector<8x32xf32>, vector<8x32xf32> -> vector<8x128xf32>
    %c0_0 = arith.constant 0 : index
    %c0_1 = arith.constant 0 : index
    %5 = vector.load %arg1[%c0_0, %c0_1] : memref<8x128xf32, #tpu.memory_space<vmem>>, vector<8x128xf32>
    %6 = arith.addf %5, %4 : vector<8x128xf32>
    %c0_2 = arith.constant 0 : index
    %c0_3 = arith.constant 0 : index
    %7 = vector.load %arg3[%c0_2, %c0_3] : memref<8x128xf32, #tpu.memory_space<vmem>>, vector<8x128xf32>
    tpu.vector_store %arg3[%c0_2, %c0_3], %6 {strides = array<i32>} : memref<8x128xf32, #tpu.memory_space<vmem>>, vector<8x128xf32>,
    return
  }
  func.func @transform_0(%arg0: i32) -> (i32, i32) {
    %c0_i32 = arith.constant 0 : i32
    %c0_i32_0 = arith.constant 0 : i32
    return %arg0, %c0_i32 : i32, i32
  }
  func.func @transform_1(%arg0: i32) -> (i32, i32) {
    %c0_i32 = arith.constant 0 : i32
    %c0_i32_0 = arith.constant 0 : i32
    %c0_i32_1 = arith.constant 0 : i32
    return %c0_i32, %c0_i32_0 : i32, i32
  }
  func.func @transform_2(%arg0: i32) -> (i32, i32) {
    %c0_i32 = arith.constant 0 : i32
    %c0_i32_0 = arith.constant 0 : i32
    return %arg0, %c0_i32 : i32, i32
  }
}

</mosaic_0001>

<llo_original>
// kernel: tpu_custom_call.1
$region0: #{tpu_custom_call.1}
  #allocation0 [shape = 'u32[]', space=smem, size = 0x4, offset = 0x4, fixed_abs, tag = 'smem constant byte address 0x4 - core index']
  #allocation1 [shape = 'u32[144,128]{1,0:T(1,128)}', space=vmem, size = 0x12000, scoped, tag = 'internal scratch']
  %s0 = inlined_call_operand.hbm [shape: f32[16,128], index: 0, kind: input, shape index: {}]
  %s1 = inlined_call_operand.hbm [shape: f32[16,32], index: 1, kind: input, shape index: {}]
  %s2 = inlined_call_operand.hbm [shape: f32[16,128], index: 2, kind: output, shape index: {}]
  %s3 = sld [smem:[#allocation0]]
  $region49: #{tpu_custom_call.1} parent=0
    _
  %s5 = ssub.s32 1, %s3
  %s6 = scalar_select 0, %s5, %s3
  $region1: #{tpu_custom_call.1} parent=0
    #allocation2 [shape = 'u8[8192]{0}', space=vmem, size = 0x2000, scoped, tag = 'input window, operand 0']
    #allocation3 [shape = 's32[2]{0}', space=sflag, size = 0x8, scoped, tag = 'scoped memory for tpu_custom_call.1']
    #allocation4 [shape = 's32[2]{0}', space=sflag, size = 0x8, scoped, tag = 'scoped memory for tpu_custom_call.1']
    #allocation5 [shape = 'u8[8192]{0}', space=vmem, size = 0x2000, scoped, tag = 'input window, operand 1, single buffered']
    #allocation6 [shape = 's32[1]{0}', space=sflag, size = 0x4, scoped, tag = 'scoped memory for tpu_custom_call.1']
    #allocation7 [shape = 'u8[8192]{0}', space=vmem, size = 0x2000, scoped, tag = 'output window, operand 0']
    %7 = vsyncpa [#allocation3], 0
    %s8 = scalar_lea.sflag [#allocation3], 1
    %9 = vsyncpa %s8, 0
    %10 = vsyncpa [#allocation6], 0
    %11 = vsyncpa [#allocation4], 0
    %s12 = scalar_lea.sflag [#allocation4], 1
    %13 = vsyncpa %s12, 0
    loop: start=0, step=1, limit=4
    $region2: #{tpu_custom_call.1} parent=1 // loop_pre_header
      _
    $region3: #{tpu_custom_call.1} parent=1 // loop_header
      %s15 = sphi 0, %s19
      %p16 = scmp.ge.s32.totalorder %s15, 4
      %s25 = sphi 0, %s27
      %s28 = sphi 0, %s25
      %s29 = sphi 0, %s28
      %s45 = sphi 0, %s29
      %s49 = sphi 0, %s49
      %s51 = sphi 0, %s49
      %s52 = sphi 0, %s51
      %s66 = sphi 0, %s52
      %s72 = sphi 0, %s74
      %s75 = sphi 0, %s72
      %s76 = sphi 0, %s75
      %s92 = sphi 0, %s76
    $region4: #{tpu_custom_call.1} parent=1 // loop_header_branch
      %18 = sbr.rel (%p16) target = $region8
    $region5: #{tpu_custom_call.1} parent=1 // loop_body
      %s20 = ssub.s32 %s15, 1
      %s21 = ssub.s32 %s15, 2
      %s22 = sadd.s32 %s15, 1
      %s23 = ssub.s32 %s15, %s22
      %p24 = scmp.eq.s32.totalorder %s23, 0
      %s26 = sadd.s32 %s25, 1
      %s27 = scalar_select %p24, %s25, %s26
      %p30 = pneg %p24
      %p31 = scmp.eq.s32.totalorder %s15, 1
      %p32 = por %p30, %p31
      %p33 = scmp.ne.s32.totalorder %s25, %s28
      %p34 = scmp.eq.s32.totalorder %s15, 0
      %p35 = por %p33, %p34
      %p36 = scmp.ne.s32.totalorder %s25, %s28
      %p37 = scmp.eq.s32.totalorder %s20, 1
      %p38 = por %p36, %p37
      %p39 = scmp.ne.s32.totalorder %s28, %s29
      %p40 = scmp.eq.s32.totalorder %s20, 0
      %p41 = por %p39, %p40
      %p42 = scmp.ne.s32.totalorder %s28, %s29
      %p43 = scmp.eq.s32.totalorder %s21, 1
      %p44 = por %p42, %p43
      %p46 = scmp.ne.s32.totalorder %s29, %s45
      %p47 = scmp.eq.s32.totalorder %s21, 0
      %p48 = por %p46, %p47
      %s50 = sadd.s32 %s49, 1
      %p53 = scmp.eq.s32.totalorder %s15, 1
      %p54 = scmp.ne.s32.totalorder %s49, %s51
      %p55 = scmp.eq.s32.totalorder %s15, 0
      %p56 = por %p54, %p55
      %p57 = scmp.ne.s32.totalorder %s49, %s51
      %p58 = scmp.eq.s32.totalorder %s20, 1
      %p59 = por %p57, %p58
      %p60 = scmp.ne.s32.totalorder %s51, %s52
      %p61 = scmp.eq.s32.totalorder %s20, 0
      %p62 = por %p60, %p61
      %p63 = scmp.ne.s32.totalorder %s51, %s52
      %p64 = scmp.eq.s32.totalorder %s21, 1
      %p65 = por %p63, %p64
      %p67 = scmp.ne.s32.totalorder %s52, %s66
      %p68 = scmp.eq.s32.totalorder %s21, 0
      %p69 = por %p67, %p68
      %s70 = ssub.s32 %s15, %s22
      %p71 = scmp.eq.s32.totalorder %s70, 0
      %s73 = sadd.s32 %s72, 1
      %s74 = scalar_select %p71, %s72, %s73
      %p77 = pneg %p71
      %p78 = scmp.eq.s32.totalorder %s15, 1
      %p79 = por %p77, %p78
      %p80 = scmp.ne.s32.totalorder %s72, %s75
      %p81 = scmp.eq.s32.totalorder %s15, 0
      %p82 = por %p80, %p81
      %p83 = scmp.ne.s32.totalorder %s72, %s75
      %p84 = scmp.eq.s32.totalorder %s20, 1
      %p85 = por %p83, %p84
      %p86 = scmp.ne.s32.totalorder %s75, %s76
      %p87 = scmp.eq.s32.totalorder %s20, 0
      %p88 = por %p86, %p87
      %p89 = scmp.ne.s32.totalorder %s75, %s76
      %p90 = scmp.eq.s32.totalorder %s21, 1
      %p91 = por %p89, %p90
      %p93 = scmp.ne.s32.totalorder %s76, %s92
      %p94 = scmp.eq.s32.totalorder %s21, 0
      %p95 = por %p93, %p94
      %p96 = scmp.le.s32.totalorder 1, %s15
      %p97 = scmp.lt.s32.totalorder %s15, 3
      %p98 = pnand %p96, %p97
      %p99 = pneg %p98
      // Predicated region
      $region9: #{tpu_custom_call.1} parent=5 // pred_check
        _
      $region10: #{tpu_custom_call.1} parent=5 // pred_check_branch
        %101 = sbr.rel (%p98) target = $region12
      $region11: #{tpu_custom_call.1} parent=5 // pred_region
        %s102 = ssub.s32 %s15, 1
        // Predicated region
        $region13: #{tpu_custom_call.1} parent=11 // pred_check
          %p103 = pneg %p62
        $region14: #{tpu_custom_call.1} parent=11 // pred_check_branch
          %105 = sbr.rel (%p103) target = $region16
        $region15: #{tpu_custom_call.1} parent=11 // pred_region
          %s107 = ssub.s32 256, 256
          %108 = vsyncadd [#allocation6], %s107
          %s109 = sshll.u32 [#allocation5], 4
          %s110 = int_to_ptr.vmem [resolvable:$true] %s109
          %115 = dma.hbm_to_vmem [thread:$0]  %s1, 256, %s110, [#allocation6], 128, 128, 8
        $region16: #{tpu_custom_call.1} parent=11 // pred_fallthru
          _
      $region12: #{tpu_custom_call.1} parent=5 // pred_fallthru
        _
      %p116 = scmp.lt.s32.totalorder %s15, 2
      // Predicated region
      $region17: #{tpu_custom_call.1} parent=5 // pred_check
        %p117 = pneg %p116
      $region18: #{tpu_custom_call.1} parent=5 // pred_check_branch
        %119 = sbr.rel (%p117) target = $region20
      $region19: #{tpu_custom_call.1} parent=5 // pred_region
        // Predicated region
        $region21: #{tpu_custom_call.1} parent=19 // pred_check
          %p120 = pneg %p35
        $region22: #{tpu_custom_call.1} parent=19 // pred_check_branch
          %122 = sbr.rel (%p120) target = $region24
        $region23: #{tpu_custom_call.1} parent=19 // pred_region
          %s123 = sand.u32 %s25, 1
          %s124 = scalar_lea.sflag [#allocation3], %s123
          %s125 = sand.u32 %s25, 1
          %s126 = smul.addr %s125, 8
          %s127 = scalar_lea.vmem [#allocation2], %s126
          %s129 = ssub.s32 128, 128
          %130 = vsyncadd %s124, %s129
          %s131 = smul.addr %s15, 128
          %s132 = scalar_lea.hbm %s0, %s131
          %s134 = sshll.u32 %s127, 4
          %s135 = int_to_ptr.vmem [resolvable:$true] %s134
          %137 = dma.hbm_to_vmem [thread:$0]  %s132, 128, %s135, %s124
        $region24: #{tpu_custom_call.1} parent=19 // pred_fallthru
          _
      $region20: #{tpu_custom_call.1} parent=5 // pred_fallthru
        _
      %p138 = scmp.le.s32.totalorder 1, %s15
      %p139 = scmp.lt.s32.totalorder %s15, 3
      %p140 = pnand %p138, %p139
      %p141 = pneg %p140
      // Predicated region
      $region25: #{tpu_custom_call.1} parent=5 // pred_check
        _
      $region26: #{tpu_custom_call.1} parent=5 // pred_check_branch
        %143 = sbr.rel (%p140) target = $region28
      $region27: #{tpu_custom_call.1} parent=5 // pred_region
        %s144 = ssub.s32 %s15, 1
        %s145 = sand.u32 %s28, 1
        %s146 = scalar_lea.sflag [#allocation3], %s145
        %s147 = sand.u32 %s28, 1
        %s148 = smul.addr %s147, 8
        %s149 = scalar_lea.vmem [#allocation2], %s148
        // Predicated region
        $region29: #{tpu_custom_call.1} parent=27 // pred_check
          %p150 = pneg %p41
        $region30: #{tpu_custom_call.1} parent=27 // pred_check_branch
          %152 = sbr.rel (%p150) target = $region32
        $region31: #{tpu_custom_call.1} parent=27 // pred_region
          %153 = dma.done %s146, 128
        $region32: #{tpu_custom_call.1} parent=27 // pred_fallthru
          _
        // Predicated region
        $region33: #{tpu_custom_call.1} parent=27 // pred_check
          %p154 = pneg %p62
        $region34: #{tpu_custom_call.1} parent=27 // pred_check_branch
          %156 = sbr.rel (%p154) target = $region36
        $region35: #{tpu_custom_call.1} parent=27 // pred_region
          %157 = dma.done [#allocation6], 256
        $region36: #{tpu_custom_call.1} parent=27 // pred_fallthru
          _
        %s158 = sand.u32 %s28, 1
        %s159 = scalar_lea.sflag [#allocation3], %s158
        %s160 = sand.u32 %s28, 1
        %s161 = smul.addr %s160, 8
        %s162 = scalar_lea.vmem [#allocation2], %s161
        %p163 = pneg %p41
        %p164 = pneg %p38
        %p165 = pneg %p62
        %p166 = pneg %p59
        %p167 = pneg %p88
        %p168 = pneg %p85
        %s169 = sand.u32 %s75, 1
        %s170 = scalar_lea.sflag [#allocation4], %s169
        %s171 = sand.u32 %s75, 1
        %s172 = smul.addr %s171, 8
        %s173 = scalar_lea.vmem [#allocation7], %s172
        %s174 = smul.u32 %s20, 8
        %s175 = scalar_lea.vmem [#allocation5], %s174
        %v176 = vld [vmem:[%s175] sm:$0xff]
        %178 = vrot.lane.b32.xlu0 %v176, 32
        %v179 = vpop.permute.xlu0 %178
        %181 = vrot.lane.b32.xlu0 %v176, 64
        %v182 = vpop.permute.xlu0 %181
        %184 = vrot.lane.b32.xlu0 %v176, 96
        %v185 = vpop.permute.xlu0 %184
        %vm187 = vcmask 261120
        %v188 = vsel %vm187, %v176, %v179
        %vm189 = vcmask 523264
        %v190 = vsel %vm189, %v188, %v182
        %vm191 = vcmask 785408
        %v192 = vsel %vm191, %v190, %v185
        %v193 = vld [vmem:[%s149] sm:$0xff]
        %v194 = vadd.f32 %v193, %v192
        %195 = vst [vmem:[%s173] sm:$0xff] %v194
        %s196 = sand.u32 %s75, 1
        %s197 = scalar_lea.sflag [#allocation4], %s196
        %s198 = sand.u32 %s75, 1
        %s199 = smul.addr %s198, 8
        %s200 = scalar_lea.vmem [#allocation7], %s199
        // Predicated region
        $region37: #{tpu_custom_call.1} parent=27 // pred_check
          %p201 = pneg %p85
        $region38: #{tpu_custom_call.1} parent=27 // pred_check_branch
          %203 = sbr.rel (%p201) target = $region40
        $region39: #{tpu_custom_call.1} parent=27 // pred_region
          %s205 = ssub.s32 128, 128
          %206 = vsyncadd %s197, %s205
          %s207 = smul.addr %s20, 128
          %s208 = scalar_lea.hbm %s2, %s207
          %s210 = sshll.u32 %s200, 4
          %s211 = int_to_ptr.vmem [resolvable:$true] %s210
          %213 = dma.vmem_to_hbm [thread:$0]  %s211, 128, %s208, %s197
        $region40: #{tpu_custom_call.1} parent=27 // pred_fallthru
          _
      $region28: #{tpu_custom_call.1} parent=5 // pred_fallthru
        _
      %p214 = scmp.le.s32.totalorder 2, %s15
      // Predicated region
      $region41: #{tpu_custom_call.1} parent=5 // pred_check
        %p215 = pneg %p214
      $region42: #{tpu_custom_call.1} parent=5 // pred_check_branch
        %217 = sbr.rel (%p215) target = $region44
      $region43: #{tpu_custom_call.1} parent=5 // pred_region
        %s218 = ssub.s32 %s15, 2
        // Predicated region
        $region45: #{tpu_custom_call.1} parent=43 // pred_check
          %p219 = pneg %p91
        $region46: #{tpu_custom_call.1} parent=43 // pred_check_branch
          %221 = sbr.rel (%p219) target = $region48
        $region47: #{tpu_custom_call.1} parent=43 // pred_region
          %s222 = sand.u32 %s76, 1
          %s223 = scalar_lea.sflag [#allocation4], %s222
          %s224 = sand.u32 %s76, 1
          %s225 = smul.addr %s224, 8
          %s226 = scalar_lea.vmem [#allocation7], %s225
          %227 = dma.done %s223, 128
        $region48: #{tpu_custom_call.1} parent=43 // pred_fallthru
          _
      $region44: #{tpu_custom_call.1} parent=5 // pred_fallthru
        _
    $region6: #{tpu_custom_call.1} parent=1 // loop_footer
      %s19 = sadd.s32 1, %s15
    $region7: #{tpu_custom_call.1} parent=1 // loop_footer_branch
      %14 = sbr.rel target = $region3
    $region8: #{tpu_custom_call.1} parent=1 // loop_exit
      _
    %228 = vsyncpa [#allocation3], 1
    %s229 = scalar_lea.sflag [#allocation3], 1
    %230 = vsyncpa %s229, 1
    %231 = vsyncpa [#allocation6], 1
    %232 = vsyncpa [#allocation4], 1
    %s233 = scalar_lea.sflag [#allocation4], 1
    %234 = vsyncpa %s233, 1

</llo_original>
